<compile_context>
chip_gen: v7x
topology: tpu7x:2x2x1
jax: 0.10.0
libtpu: 0.0.40
codegen_flags: <defaults>
</compile_context>

<pallas_src>
import jax
import jax.numpy as jnp
from jax.experimental import pallas as pl
from jax.experimental.pallas import tpu as pltpu


def _round_up(x, m):
    return ((x + m - 1) // m) * m


def _device_kind():
    try:
        return jax.devices()[0].device_kind.lower()
    except Exception:
        return ""


def _make_mlp_kernel(act_dtype):
    def _mlp_kernel(x_ref, w1_ref, b1_ref, w2_ref, b2_ref, w3_ref, b3_ref,
                    w4_ref, b4_ref, o_ref):
        wdt = w1_ref.dtype  # MXU operand dtype (f32 or bf16); accumulation is f32

        # fc1 + relu  (x already cast to wdt in the wrapper)
        h = jnp.dot(x_ref[...], w1_ref[...], preferred_element_type=jnp.float32)
        h = jnp.maximum(h.astype(act_dtype) + b1_ref[...], 0)
        # fc2 + relu
        h = jnp.dot(h.astype(wdt), w2_ref[...], preferred_element_type=jnp.float32)
        h = jnp.maximum(h.astype(act_dtype) + b2_ref[...], 0)
        # fc3 + relu
        h = jnp.dot(h.astype(wdt), w3_ref[...], preferred_element_type=jnp.float32)
        h = jnp.maximum(h.astype(act_dtype) + b3_ref[...], 0)
        # output layer + 100 * sigmoid (final elementwise kept in f32)
        h = jnp.dot(h.astype(wdt), w4_ref[...], preferred_element_type=jnp.float32)
        h = h + b4_ref[...]
        o_ref[...] = (100.0 * jax.nn.sigmoid(h)).astype(o_ref.dtype)

    return _mlp_kernel


def ann_forward(x, params, *, batch_tile=None, weight_dtype=None,
                activation_dtype=None):
    """Fused ANN forward.  x: (B, 20) float32.

    batch_tile       None -> single step for B<=256; else >=2 steps of
                     256-aligned tiles capped at 1024 rows.
    weight_dtype     None -> bf16 MXU operands on the multi-step path, f32 on
                     the single-step latency path.
    activation_dtype None -> bf16 bias/ReLU on chips with a bf16 VALU (v6e/v7x)
                     when weights are bf16; f32 otherwise (v5e-safe).
    """
    (w1, b1), (w2, b2), (w3, b3), (w4, b4) = params
    B, F_in = x.shape
    F_out = w4.shape[1]

    # ---- batch tiling -------------------------------------------------------
    if batch_tile is None:
        if B <= 256:
            batch_tile = B                                   # single latency step
        else:
            # >= 2 parallel steps (both v7x TCs), 256-aligned, <= 1024 rows.
            batch_tile = min(_round_up(-(-B // 2), 256), 1024)
    if batch_tile != B and batch_tile % 8 != 0:              # sublane alignment
        batch_tile = _round_up(batch_tile, 8)
    B_pad = _round_up(B, batch_tile)
    n_steps = B_pad // batch_tile

    # ---- dtypes -------------------------------------------------------------
    kind = _device_kind()
    if weight_dtype is None:
        weight_dtype = jnp.bfloat16 if n_steps > 1 else jnp.float32
    if activation_dtype is None:
        bf16_valu = not any(t in kind for t in ("v2", "v3", "v4", "v5"))
        activation_dtype = (jnp.bfloat16
                            if (weight_dtype == jnp.bfloat16 and bf16_valu)
                            else jnp.float32)

    # ---- lane-dense output only on the single-step latency path -------------
    pad_out = (n_steps == 1)
    N_out = _round_up(F_out, 128) if pad_out else F_out
    if N_out != F_out:
        w4 = jnp.pad(w4, ((0, 0), (0, N_out - F_out)))
        b4 = jnp.pad(b4, ((0, N_out - F_out),))

    # ---- operand casts (once, in the wrapper) -------------------------------
    if weight_dtype != jnp.float32:
        w1, w2, w3, w4 = (w.astype(weight_dtype) for w in (w1, w2, w3, w4))
        x = x.astype(weight_dtype)
    if B_pad != B:
        x = jnp.pad(x, ((0, B_pad - B), (0, 0)))

    # biases as (1, out) so they broadcast over the batch tile inside the kernel
    b1r, b2r, b3r = (b.reshape(1, -1).astype(activation_dtype)
                     for b in (b1, b2, b3))
    b4r = b4.reshape(1, -1).astype(jnp.float32)

    # ---- cost estimate so XLA can overlap the (tiny at small B) call --------
    flops = 2 * B_pad * (F_in * 128 + 128 * 256 + 256 * 128 + 128 * N_out)
    bytes_accessed = (int(x.size) * x.dtype.itemsize
                      + sum(int(a.size) * a.dtype.itemsize
                            for a in (w1, w2, w3, w4, b1r, b2r, b3r, b4r))
                      + B_pad * N_out * 4)
    cost = pl.CostEstimate(flops=flops, transcendentals=B_pad * N_out,
                           bytes_accessed=bytes_accessed)

    ckw = dict(dimension_semantics=("parallel",))
    if batch_tile >= 4096:
        ckw["vmem_limit_bytes"] = 64 * 1024 * 1024

    def resident(arr):
        # whole array, constant block index across the grid -> stays resident
        return pl.BlockSpec(arr.shape, lambda i: (0, 0))

    out = pl.pallas_call(
        _make_mlp_kernel(activation_dtype),
        out_shape=jax.ShapeDtypeStruct((B_pad, N_out), jnp.float32),
        grid_spec=pltpu.PrefetchScalarGridSpec(
            num_scalar_prefetch=0,
            grid=(n_steps,),
            in_specs=[
                pl.BlockSpec((batch_tile, F_in), lambda i: (i, 0)),
                resident(w1), resident(b1r),
                resident(w2), resident(b2r),
                resident(w3), resident(b3r),
                resident(w4), resident(b4r),
            ],
            out_specs=pl.BlockSpec((batch_tile, N_out), lambda i: (i, 0)),
        ),
        compiler_params=pltpu.CompilerParams(**ckw),
        cost_estimate=cost,
    )(x, w1, b1r, w2, b2r, w3, b3r, w4, b4r)

    out = out[:B]
    if N_out != F_out:
        out = out[:, :F_out]
    return out


def init_params(key):
    """Deterministic PyTorch-style (uniform +/- 1/sqrt(fan_in)) init for the 4
    Linear layers. Weights stored as (in_features, out_features) == W^T."""
    dims = [(20, 128), (128, 256), (256, 128), (128, 20)]
    params = []
    for (fan_in, fan_out) in dims:
        key, kw, kb = jax.random.split(key, 3)
        bound = 1.0 / jnp.sqrt(fan_in)
        w = jax.random.uniform(kw, (fan_in, fan_out), jnp.float32, -bound, bound)
        b = jax.random.uniform(kb, (fan_out,), jnp.float32, -bound, bound)
        params.append((w, b))
    return params


def ann_reference(x, params, weight_dtype=None):
    h = x
    for i, (w, b) in enumerate(params):
        if weight_dtype is not None:
            hm = h.astype(weight_dtype).astype(jnp.float32)
            wm = w.astype(weight_dtype).astype(jnp.float32)
        else:
            hm, wm = h, w
        h = hm @ wm + b
        if i < 3:
            h = jnp.maximum(h, 0.0)
    return 100.0 * jax.nn.sigmoid(h)


if __name__ == "__main__":
    key = jax.random.PRNGKey(0)
    kp, kx, kx2, kx3 = jax.random.split(key, 4)
    params = init_params(kp)

    # --- small batch: single grid step, f32 everywhere (tight tolerance) ---
    B = 16
    x = jax.random.normal(kx, (B, 20), jnp.float32)
    out = jax.block_until_ready(ann_forward(x, params))
    ref = ann_reference(x, params)
    assert out.shape == (B, 20)
    assert jnp.allclose(out, ref, atol=1e-4, rtol=1e-4), "f32 mismatch vs reference"

    # --- small batch: bf16 MXU operands, f32 elementwise (v5e-style path) ---
    out_bf16 = jax.block_until_ready(
        ann_forward(x, params, weight_dtype=jnp.bfloat16,
                    activation_dtype=jnp.float32))
    ref_bf16 = ann_reference(x, params, weight_dtype=jnp.bfloat16)
    assert jnp.allclose(out_bf16, ref_bf16, atol=5e-2, rtol=1e-2), \
        "bf16-weight mismatch vs reference"

    # --- ragged batch, forced multi-step grid, narrow (20-wide) output blocks ---
    B2 = 40
    x2 = jax.random.normal(kx2, (B2, 20), jnp.float32)
    out2 = jax.block_until_ready(
        ann_forward(x2, params, batch_tile=16, weight_dtype=jnp.float32,
                    activation_dtype=jnp.float32))
    ref2 = ann_reference(x2, params)
    assert out2.shape == (B2, 20)
    assert jnp.allclose(out2, ref2, atol=1e-4, rtol=1e-4), "tiled mismatch vs reference"

    # --- larger batch: default auto path (>=2 parallel steps, bf16 weights,
    #     bf16 activations where the VALU supports it) ---
    B3 = 384
    x3 = jax.random.normal(kx3, (B3, 20), jnp.float32)
    out3 = jax.block_until_ready(ann_forward(x3, params))
    ref3 = ann_reference(x3, params)
    assert out3.shape == (B3, 20)
    assert jnp.allclose(out3, ref3, atol=2.0, rtol=5e-2), \
        "auto (bf16) mismatch vs reference"

    print("KERNEL_OK")
</pallas_src>

<mosaic_0001>
module attributes {stable_mosaic.version = 11 : i64} {
  func.func @_mlp_kernel(%arg0: i32, %arg1: memref<16x20xf32, #tpu.memory_space<vmem>>, %arg2: memref<20x128xf32, #tpu.memory_space<vmem>>, %arg3: memref<1x128xf32, #tpu.memory_space<vmem>>, %arg4: memref<128x256xf32, #tpu.memory_space<vmem>>, %arg5: memref<1x256xf32, #tpu.memory_space<vmem>>, %arg6: memref<256x128xf32, #tpu.memory_space<vmem>>, %arg7: memref<1x128xf32, #tpu.memory_space<vmem>>, %arg8: memref<128x128xf32, #tpu.memory_space<vmem>>, %arg9: memref<1x128xf32, #tpu.memory_space<vmem>>, %arg10: memref<16x128xf32, #tpu.memory_space<vmem>>) attributes {dimension_semantics = [#tpu.dimension_semantics<parallel>], iteration_bounds = array<i64: 1>, scalar_prefetch = 0 : i64, scratch_operands = 0 : i64, tpu.core_type = #tpu.core_type<tc>, window_params = [{transform_indices = @transform_0, window_bounds = array<i64: 16, 20>}, {pipeline_mode = #tpu.pipeline_mode<synchronous>, transform_indices = @transform_1, window_bounds = array<i64: 20, 128>}, {pipeline_mode = #tpu.pipeline_mode<synchronous>, transform_indices = @transform_2, window_bounds = array<i64: 1, 128>}, {pipeline_mode = #tpu.pipeline_mode<synchronous>, transform_indices = @transform_3, window_bounds = array<i64: 128, 256>}, {pipeline_mode = #tpu.pipeline_mode<synchronous>, transform_indices = @transform_4, window_bounds = array<i64: 1, 256>}, {pipeline_mode = #tpu.pipeline_mode<synchronous>, transform_indices = @transform_5, window_bounds = array<i64: 256, 128>}, {pipeline_mode = #tpu.pipeline_mode<synchronous>, transform_indices = @transform_6, window_bounds = array<i64: 1, 128>}, {pipeline_mode = #tpu.pipeline_mode<synchronous>, transform_indices = @transform_7, window_bounds = array<i64: 128, 128>}, {pipeline_mode = #tpu.pipeline_mode<synchronous>, transform_indices = @transform_8, window_bounds = array<i64: 1, 128>}, {transform_indices = @transform_9, window_bounds = array<i64: 16, 128>}]} {
    %c0 = arith.constant 0 : index
    %c0_0 = arith.constant 0 : index
    %0 = vector.load %arg1[%c0, %c0_0] : memref<16x20xf32, #tpu.memory_space<vmem>>, vector<16x20xf32>
    %c0_1 = arith.constant 0 : index
    %c0_2 = arith.constant 0 : index
    %1 = vector.load %arg2[%c0_1, %c0_2] : memref<20x128xf32, #tpu.memory_space<vmem>>, vector<20x128xf32>
    %cst = arith.constant dense<0.000000e+00> : vector<16x128xf32>
    %2 = tpu.matmul %0, %1, %cst {dimension_numbers = #tpu.dot_dimension_numbers<[1], [0], [0], [1], [0, 0, 1, 1], [], []>} : vector<16x20xf32>, vector<20x128xf32>, vector<16x128xf32> -> vector<16x128xf32>
    %c0_3 = arith.constant 0 : index
    %c0_4 = arith.constant 0 : index
    %3 = vector.load %arg3[%c0_3, %c0_4] : memref<1x128xf32, #tpu.memory_space<vmem>>, vector<1x128xf32>
    %4 = vector.broadcast %3 : vector<1x128xf32> to vector<16x128xf32>
    %5 = arith.addf %2, %4 : vector<16x128xf32>
    %cst_5 = arith.constant 0.000000e+00 : f32
    %6 = vector.broadcast %cst_5 : f32 to vector<16x128xf32>
    %7 = arith.maximumf %5, %6 : vector<16x128xf32>
    %c0_6 = arith.constant 0 : index
    %c0_7 = arith.constant 0 : index
    %8 = vector.load %arg4[%c0_6, %c0_7] : memref<128x256xf32, #tpu.memory_space<vmem>>, vector<128x256xf32>
    %cst_8 = arith.constant dense<0.000000e+00> : vector<16x256xf32>
    %9 = tpu.matmul %7, %8, %cst_8 {dimension_numbers = #tpu.dot_dimension_numbers<[1], [0], [0], [1], [0, 0, 1, 1], [], []>} : vector<16x128xf32>, vector<128x256xf32>, vector<16x256xf32> -> vector<16x256xf32>
    %c0_9 = arith.constant 0 : index
    %c0_10 = arith.constant 0 : index
    %10 = vector.load %arg5[%c0_9, %c0_10] : memref<1x256xf32, #tpu.memory_space<vmem>>, vector<1x256xf32>
    %11 = vector.broadcast %10 : vector<1x256xf32> to vector<16x256xf32>
    %12 = arith.addf %9, %11 : vector<16x256xf32>
    %cst_11 = arith.constant 0.000000e+00 : f32
    %13 = vector.broadcast %cst_11 : f32 to vector<16x256xf32>
    %14 = arith.maximumf %12, %13 : vector<16x256xf32>
    %c0_12 = arith.constant 0 : index
    %c0_13 = arith.constant 0 : index
    %15 = vector.load %arg6[%c0_12, %c0_13] : memref<256x128xf32, #tpu.memory_space<vmem>>, vector<256x128xf32>
    %cst_14 = arith.constant dense<0.000000e+00> : vector<16x128xf32>
    %16 = tpu.matmul %14, %15, %cst_14 {dimension_numbers = #tpu.dot_dimension_numbers<[1], [0], [0], [1], [0, 0, 1, 1], [], []>} : vector<16x256xf32>, vector<256x128xf32>, vector<16x128xf32> -> vector<16x128xf32>
    %c0_15 = arith.constant 0 : index
    %c0_16 = arith.constant 0 : index
    %17 = vector.load %arg7[%c0_15, %c0_16] : memref<1x128xf32, #tpu.memory_space<vmem>>, vector<1x128xf32>
    %18 = vector.broadcast %17 : vector<1x128xf32> to vector<16x128xf32>
    %19 = arith.addf %16, %18 : vector<16x128xf32>
    %cst_17 = arith.constant 0.000000e+00 : f32
    %20 = vector.broadcast %cst_17 : f32 to vector<16x128xf32>
    %21 = arith.maximumf %19, %20 : vector<16x128xf32>
    %c0_18 = arith.constant 0 : index
    %c0_19 = arith.constant 0 : index
    %22 = vector.load %arg8[%c0_18, %c0_19] : memref<128x128xf32, #tpu.memory_space<vmem>>, vector<128x128xf32>
    %cst_20 = arith.constant dense<0.000000e+00> : vector<16x128xf32>
    %23 = tpu.matmul %21, %22, %cst_20 {dimension_numbers = #tpu.dot_dimension_numbers<[1], [0], [0], [1], [0, 0, 1, 1], [], []>} : vector<16x128xf32>, vector<128x128xf32>, vector<16x128xf32> -> vector<16x128xf32>
    %c0_21 = arith.constant 0 : index
    %c0_22 = arith.constant 0 : index
    %24 = vector.load %arg9[%c0_21, %c0_22] : memref<1x128xf32, #tpu.memory_space<vmem>>, vector<1x128xf32>
    %25 = vector.broadcast %24 : vector<1x128xf32> to vector<16x128xf32>
    %26 = arith.addf %23, %25 : vector<16x128xf32>
    %27 = arith.negf %26 : vector<16x128xf32>
    %28 = math.exp %27 : vector<16x128xf32>
    %cst_23 = arith.constant 1.000000e+00 : f32
    %29 = vector.broadcast %cst_23 : f32 to vector<16x128xf32>
    %30 = arith.addf %29, %28 : vector<16x128xf32>
    %31 = arith.divf %29, %30 : vector<16x128xf32>
    %cst_24 = arith.constant 1.000000e+02 : f32
    %32 = vector.broadcast %cst_24 : f32 to vector<16x128xf32>
    %33 = arith.mulf %32, %31 : vector<16x128xf32>
    %c0_25 = arith.constant 0 : index
    %c0_26 = arith.constant 0 : index
    %34 = vector.load %arg10[%c0_25, %c0_26] : memref<16x128xf32, #tpu.memory_space<vmem>>, vector<16x128xf32>
    tpu.vector_store %arg10[%c0_25, %c0_26], %33 {strides = array<i32>} : memref<16x128xf32, #tpu.memory_space<vmem>>, vector<16x128xf32>,
    return
  }
  func.func @transform_0(%arg0: i32) -> (i32, i32) {
    %c0_i32 = arith.constant 0 : i32
    %c0_i32_0 = arith.constant 0 : i32
    return %arg0, %c0_i32 : i32, i32
  }
  func.func @transform_1(%arg0: i32) -> (i32, i32) {
    %c0_i32 = arith.constant 0 : i32
    %c0_i32_0 = arith.constant 0 : i32
    %c0_i32_1 = arith.constant 0 : i32
    return %c0_i32, %c0_i32_0 : i32, i32
  }
  func.func @transform_2(%arg0: i32) -> (i32, i32) {
    %c0_i32 = arith.constant 0 : i32
    %c0_i32_0 = arith.constant 0 : i32
    %c0_i32_1 = arith.constant 0 : i32
    return %c0_i32, %c0_i32_0 : i32, i32
  }
  func.func @transform_3(%arg0: i32) -> (i32, i32) {
    %c0_i32 = arith.constant 0 : i32
    %c0_i32_0 = arith.constant 0 : i32
    %c0_i32_1 = arith.constant 0 : i32
    return %c0_i32, %c0_i32_0 : i32, i32
  }
  func.func @transform_4(%arg0: i32) -> (i32, i32) {
    %c0_i32 = arith.constant 0 : i32
    %c0_i32_0 = arith.constant 0 : i32
    %c0_i32_1 = arith.constant 0 : i32
    return %c0_i32, %c0_i32_0 : i32, i32
  }
  func.func @transform_5(%arg0: i32) -> (i32, i32) {
    %c0_i32 = arith.constant 0 : i32
    %c0_i32_0 = arith.constant 0 : i32
    %c0_i32_1 = arith.constant 0 : i32
    return %c0_i32, %c0_i32_0 : i32, i32
  }
  func.func @transform_6(%arg0: i32) -> (i32, i32) {
    %c0_i32 = arith.constant 0 : i32
    %c0_i32_0 = arith.constant 0 : i32
    %c0_i32_1 = arith.constant 0 : i32
    return %c0_i32, %c0_i32_0 : i32, i32
  }
  func.func @transform_7(%arg0: i32) -> (i32, i32) {
    %c0_i32 = arith.constant 0 : i32
    %c0_i32_0 = arith.constant 0 : i32
    %c0_i32_1 = arith.constant 0 : i32
    return %c0_i32, %c0_i32_0 : i32, i32
  }
  func.func @transform_8(%arg0: i32) -> (i32, i32) {
    %c0_i32 = arith.constant 0 : i32
    %c0_i32_0 = arith.constant 0 : i32
    %c0_i32_1 = arith.constant 0 : i32
    return %c0_i32, %c0_i32_0 : i32, i32
  }
  func.func @transform_9(%arg0: i32) -> (i32, i32) {
    %c0_i32 = arith.constant 0 : i32
    %c0_i32_0 = arith.constant 0 : i32
    return %arg0, %c0_i32 : i32, i32
  }
}

</mosaic_0001>

<llo_original>
// kernel: tpu_custom_call.1
$region0: #{tpu_custom_call.1}
  #allocation0 [shape = 'u32[]', space=smem, size = 0x4, offset = 0x4, fixed_abs, tag = 'smem constant byte address 0x4 - core index']
  #allocation1 [shape = 'u32[144,128]{1,0:T(1,128)}', space=vmem, size = 0x12000, scoped, tag = 'internal scratch']
  %s0 = inlined_call_operand.hbm [shape: f32[16,20], index: 0, kind: input, shape index: {}]
  %s1 = inlined_call_operand.hbm [shape: f32[20,128], index: 1, kind: input, shape index: {}]
  %s2 = inlined_call_operand.vmem [shape: f32[1,128], index: 2, kind: input, shape index: {}]
  %s3 = inlined_call_operand.hbm [shape: f32[128,256], index: 3, kind: input, shape index: {}]
  %s4 = inlined_call_operand.vmem [shape: f32[1,256], index: 4, kind: input, shape index: {}]
  %s5 = inlined_call_operand.hbm [shape: f32[256,128], index: 5, kind: input, shape index: {}]
  %s6 = inlined_call_operand.vmem [shape: f32[1,128], index: 6, kind: input, shape index: {}]
  %s7 = inlined_call_operand.hbm [shape: f32[128,128], index: 7, kind: input, shape index: {}]
  %s8 = inlined_call_operand.vmem [shape: f32[1,128], index: 8, kind: input, shape index: {}]
  %s9 = inlined_call_operand.hbm [shape: f32[16,128], index: 9, kind: output, shape index: {}]
  %s10 = sld [smem:[#allocation0]]
  $region66: #{tpu_custom_call.1} parent=0
    _
  %s12 = ssub.s32 1, %s10
  %s13 = scalar_select 0, %s12, %s10
  $region1: #{tpu_custom_call.1} parent=0
    #allocation2 [shape = 'u8[8192]{0}', space=vmem, size = 0x2000, scoped, tag = 'input window, operand 0, single buffered']
    #allocation3 [shape = 's32[1]{0}', space=sflag, size = 0x4, scoped, tag = 'scoped memory for tpu_custom_call.1']
    #allocation4 [shape = 's32[1]{0}', space=sflag, size = 0x4, scoped, tag = 'scoped memory for tpu_custom_call.1']
    #allocation5 [shape = 'u8[12288]{0}', space=vmem, size = 0x3000, scoped, tag = 'input window, operand 1, single buffered']
    #allocation6 [shape = 's32[1]{0}', space=sflag, size = 0x4, scoped, tag = 'scoped memory for tpu_custom_call.1']
    #allocation7 [shape = 'u8[131072]{0}', space=vmem, size = 0x20000, scoped, tag = 'input window, operand 3, single buffered']
    #allocation8 [shape = 'u8[131072]{0}', space=vmem, size = 0x20000, scoped, tag = 'input window, operand 5, single buffered']
    #allocation9 [shape = 's32[1]{0}', space=sflag, size = 0x4, scoped, tag = 'scoped memory for tpu_custom_call.1']
    #allocation10 [shape = 'u8[65536]{0}', space=vmem, size = 0x10000, scoped, tag = 'input window, operand 7, single buffered']
    #allocation11 [shape = 'u8[8192]{0}', space=vmem, size = 0x2000, scoped, tag = 'output window, operand 0, single buffered']
    %14 = vsyncpa [#allocation3], 0
    %15 = vsyncpa [#allocation6], 0
    %16 = vsyncpa [#allocation9], 0
    %17 = vsyncpa [#allocation4], 0
    // Predicated region
    $region2: #{tpu_custom_call.1} parent=1 // pred_check
      _
    $region3: #{tpu_custom_call.1} parent=1 // pred_check_branch
      %19 = sbr.rel (0) target = $region5
    $region4: #{tpu_custom_call.1} parent=1 // pred_region
      %s21 = ssub.s32 256, 256
      %22 = vsyncadd [#allocation3], %s21
      %s23 = sshll.u32 [#allocation2], 4
      %s24 = int_to_ptr.vmem [resolvable:$true] %s23
      %29 = dma.hbm_to_vmem [thread:$0]  %s0, 256, %s24, [#allocation3], 128, 128, 8
    $region5: #{tpu_custom_call.1} parent=1 // pred_fallthru
      _
    // Predicated region
    $region6: #{tpu_custom_call.1} parent=1 // pred_check
      _
    $region7: #{tpu_custom_call.1} parent=1 // pred_check_branch
      %31 = sbr.rel (0) target = $region9
    $region8: #{tpu_custom_call.1} parent=1 // pred_region
      %s33 = ssub.s32 384, 384
      %34 = vsyncadd [#allocation6], %s33
      %s35 = sshll.u32 [#allocation5], 4
      %s36 = int_to_ptr.vmem [resolvable:$true] %s35
      %41 = dma.hbm_to_vmem [thread:$0]  %s1, 384, %s36, [#allocation6], 128, 128, 8
    $region9: #{tpu_custom_call.1} parent=1 // pred_fallthru
      _
    // Predicated region
    $region10: #{tpu_custom_call.1} parent=1 // pred_check
      _
    $region11: #{tpu_custom_call.1} parent=1 // pred_check_branch
      %43 = sbr.rel (0) target = $region13
    $region12: #{tpu_custom_call.1} parent=1 // pred_region
      _
    $region13: #{tpu_custom_call.1} parent=1 // pred_fallthru
      _
    // Predicated region
    $region14: #{tpu_custom_call.1} parent=1 // pred_check
      _
    $region15: #{tpu_custom_call.1} parent=1 // pred_check_branch
      %45 = sbr.rel (0) target = $region17
    $region16: #{tpu_custom_call.1} parent=1 // pred_region
      %s47 = ssub.s32 4096, 4096
      %48 = vsyncadd [#allocation6], %s47
      %s49 = sshll.u32 [#allocation7], 4
      %s50 = int_to_ptr.vmem [resolvable:$true] %s49
      %55 = dma.hbm_to_vmem [thread:$0]  %s3, 4096, %s50, [#allocation6], 256, 256, 16
    $region17: #{tpu_custom_call.1} parent=1 // pred_fallthru
      _
    // Predicated region
    $region18: #{tpu_custom_call.1} parent=1 // pred_check
      _
    $region19: #{tpu_custom_call.1} parent=1 // pred_check_branch
      %57 = sbr.rel (0) target = $region21
    $region20: #{tpu_custom_call.1} parent=1 // pred_region
      _
    $region21: #{tpu_custom_call.1} parent=1 // pred_fallthru
      _
    // Predicated region
    $region22: #{tpu_custom_call.1} parent=1 // pred_check
      _
    $region23: #{tpu_custom_call.1} parent=1 // pred_check_branch
      %59 = sbr.rel (0) target = $region25
    $region24: #{tpu_custom_call.1} parent=1 // pred_region
      %s61 = ssub.s32 4096, 4096
      %62 = vsyncadd [#allocation9], %s61
      %s63 = sshll.u32 [#allocation8], 4
      %s64 = int_to_ptr.vmem [resolvable:$true] %s63
      %69 = dma.hbm_to_vmem [thread:$0]  %s5, 4096, %s64, [#allocation9], 128, 128, 8
    $region25: #{tpu_custom_call.1} parent=1 // pred_fallthru
      _
    // Predicated region
    $region26: #{tpu_custom_call.1} parent=1 // pred_check
      _
    $region27: #{tpu_custom_call.1} parent=1 // pred_check_branch
      %71 = sbr.rel (0) target = $region29
    $region28: #{tpu_custom_call.1} parent=1 // pred_region
      _
    $region29: #{tpu_custom_call.1} parent=1 // pred_fallthru
      _
    // Predicated region
    $region30: #{tpu_custom_call.1} parent=1 // pred_check
      _
    $region31: #{tpu_custom_call.1} parent=1 // pred_check_branch
      %73 = sbr.rel (0) target = $region33
    $region32: #{tpu_custom_call.1} parent=1 // pred_region
      %s75 = ssub.s32 2048, 2048
      %76 = vsyncadd [#allocation9], %s75
      %s77 = sshll.u32 [#allocation10], 4
      %s78 = int_to_ptr.vmem [resolvable:$true] %s77
      %83 = dma.hbm_to_vmem [thread:$0]  %s7, 2048, %s78, [#allocation9], 128, 128, 8
    $region33: #{tpu_custom_call.1} parent=1 // pred_fallthru
      _
    // Predicated region
    $region34: #{tpu_custom_call.1} parent=1 // pred_check
      _
    $region35: #{tpu_custom_call.1} parent=1 // pred_check_branch
      %85 = sbr.rel (0) target = $region37
    $region36: #{tpu_custom_call.1} parent=1 // pred_region
      _
    $region37: #{tpu_custom_call.1} parent=1 // pred_fallthru
      _
    // Predicated region
    $region38: #{tpu_custom_call.1} parent=1 // pred_check
      _
    $region39: #{tpu_custom_call.1} parent=1 // pred_check_branch
      %87 = sbr.rel (0) target = $region41
    $region40: #{tpu_custom_call.1} parent=1 // pred_region
      %88 = dma.done [#allocation3], 256
    $region41: #{tpu_custom_call.1} parent=1 // pred_fallthru
      _
    // Predicated region
    $region42: #{tpu_custom_call.1} parent=1 // pred_check
      _
    $region43: #{tpu_custom_call.1} parent=1 // pred_check_branch
      %90 = sbr.rel (0) target = $region45
    $region44: #{tpu_custom_call.1} parent=1 // pred_region
      %91 = dma.done [#allocation6], 384
    $region45: #{tpu_custom_call.1} parent=1 // pred_fallthru
      _
    // Predicated region
    $region46: #{tpu_custom_call.1} parent=1 // pred_check
      _
    $region47: #{tpu_custom_call.1} parent=1 // pred_check_branch
      %93 = sbr.rel (0) target = $region49
    $region48: #{tpu_custom_call.1} parent=1 // pred_region
      %94 = dma.done [#allocation6], 4096
    $region49: #{tpu_custom_call.1} parent=1 // pred_fallthru
      _
    // Predicated region
    $region50: #{tpu_custom_call.1} parent=1 // pred_check
      _
    $region51: #{tpu_custom_call.1} parent=1 // pred_check_branch
      %96 = sbr.rel (0) target = $region53
    $region52: #{tpu_custom_call.1} parent=1 // pred_region
      %97 = dma.done [#allocation9], 4096
    $region53: #{tpu_custom_call.1} parent=1 // pred_fallthru
      _
    // Predicated region
    $region54: #{tpu_custom_call.1} parent=1 // pred_check
      _
    $region55: #{tpu_custom_call.1} parent=1 // pred_check_branch
      %99 = sbr.rel (0) target = $region57
    $region56: #{tpu_custom_call.1} parent=1 // pred_region
      %100 = dma.done [#allocation9], 2048
    $region57: #{tpu_custom_call.1} parent=1 // pred_fallthru
      _
    %v101 = vld [vmem:[#allocation2] sm:$0xff]
    %v102 = vld [vmem:[#allocation2 + $0x8] sm:$0xff]
    %v103 = vld [vmem:[#allocation5] sm:$0xff]
    %v104 = vld [vmem:[#allocation5 + $0x8] sm:$0xff]
    %v105 = vld [vmem:[#allocation5 + $0x10] sm:$0xf]
    %v106 = vld [vmem:[%s2] sm:$0x1]
    %v108 = vlaneseq
    %v109 = vshrl.u32 %v108, 7
    %v110 = vsub.s32 0, %v109
    %v111 = vrot.slane %v106, %v110
    %vm113 = vcmask 162816
    %v115 = vsel %vm113, %v101, 0
    %v118 = vsel %vm113, %v102, 0
    %vm120 = vcmask 1043456
    %v122 = vsel %vm120, %v105, 0
    %124 = vmatprep.subr.mxu0 0.0
    %125 = vmatpush1.msra.mxu0 %v103
    %126 = vmatprep.subr.mxu0 0.0
    %127 = vmatpush1.msra.mxu0 %v104
    %128 = vmatprep.subr.mxu0 0.0
    %129 = vmatpush1.msra.mxu0 %v122
    %130 = vmatprep.subr.mxu0 0.0
    %131 = vmatpush1.msra.mxu0 0.0
    %132 = vmatprep.subr.mxu0 0.0
    %133 = vmatpush1.msra.mxu0 0.0
    %134 = vmatprep.subr.mxu0 0.0
    %135 = vmatpush1.msra.mxu0 0.0
    %136 = vmatprep.subr.mxu0 0.0
    %137 = vmatpush1.msra.mxu0 0.0
    %138 = vmatprep.subr.mxu0 0.0
    %139 = vmatpush1.msra.mxu0 0.0
    %140 = vmatprep.subr.mxu0 0.0
    %141 = vmatpush1.msra.mxu0 0.0
    %142 = vmatprep.subr.mxu0 0.0
    %143 = vmatpush1.msra.mxu0 0.0
    %144 = vmatprep.subr.mxu0 0.0
    %145 = vmatpush1.msra.mxu0 0.0
    %146 = vmatprep.subr.mxu0 0.0
    %147 = vmatpush1.msra.mxu0 0.0
    %148 = vmatprep.subr.mxu0 0.0
    %149 = vmatpush1.msra.mxu0 0.0
    %150 = vmatprep.subr.mxu0 0.0
    %151 = vmatpush1.msra.mxu0 0.0
    %152 = vmatprep.subr.mxu0 0.0
    %153 = vmatpush1.msra.mxu0 0.0
    %154 = vmatprep.subr.mxu0 0.0
    %155 = vmatpush1.msra.mxu0 0.0
    %156 = vmatprep.subr.mxu0 0.0
    %157 = vmatpush1.msra.mxu0 0.0
    %158 = vmatprep.subr.mxu0 0.0
    %159 = vmatpush1.msra.mxu0 0.0
    %160 = vmatprep.subr.mxu0 0.0
    %161 = vmatpush1.msra.mxu0 0.0
    %162 = vmatprep.subr.mxu0 0.0
    %163 = vmatpush1.msra.mxu0 0.0
    %164 = vmatprep.subr.mxu0 0.0
    %165 = vmatpush1.msra.mxu0 0.0
    %166 = vmatprep.subr.mxu0 0.0
    %167 = vmatpush1.msra.mxu0 0.0
    %168 = vmatprep.subr.mxu0 0.0
    %169 = vmatpush1.msra.mxu0 0.0
    %170 = vmatprep.subr.mxu0 0.0
    %171 = vmatpush1.msra.mxu0 0.0
    %172 = vmatprep.subr.mxu0 0.0
    %173 = vmatpush1.msra.mxu0 0.0
    %174 = vmatprep.subr.mxu0 0.0
    %175 = vmatpush1.msra.mxu0 0.0
    %176 = vmatprep.subr.mxu0 0.0
    %177 = vmatpush1.msra.mxu0 0.0
    %178 = vmatprep.subr.mxu0 0.0
    %179 = vmatpush1.msra.mxu0 0.0
    %180 = vmatprep.subr.mxu0 0.0
    %181 = vmatpush1.msra.mxu0 0.0
    %182 = vmatprep.subr.mxu0 0.0
    %183 = vmatpush1.msra.mxu0 0.0
    %184 = vmatprep.subr.mxu0 0.0
    %185 = vmatpush1.msra.mxu0 0.0
    %186 = vmatprep.subr.mxu0 0.0
    %187 = vmatpush1.msra.mxu0 0.0
    %188 = vmatprep.mubr.f32.mxu0 0.0
    %189 = vmatmul.mubr.f32.gmra.mrb[0].mxu0 %v115
    %v190 = vpop.f32.mrb[0].mxu0
    %v191 = vadd.f32 %v111, %v190
    %v192 = vpop.f32.mrb[0].mxu0
    %193 = vmatprep.mubr.f32.mxu0 0.0
    %194 = vmatmul.mubr.f32.gmra.mrb[0].mxu0 %v118
    %v195 = vpop.f32.mrb[0].mxu0
    %v196 = vadd.f32 %v111, %v195
    %v197 = vpop.f32.mrb[0].mxu0
    %198 = vdwg.mxu0
    %v199 = vmax.f32 %v191, 0.0
    %v200 = vmax.f32 %v196, 0.0
    %v201 = vld [vmem:[#allocation7] sm:$0xff]
    %v202 = vld [vmem:[#allocation7 + $0x8] sm:$0xff]
    %v203 = vld [vmem:[#allocation7 + $0x10] sm:$0xff]
    %v204 = vld [vmem:[#allocation7 + $0x18] sm:$0xff]
    %v205 = vld [vmem:[#allocation7 + $0x20] sm:$0xff]
    %v206 = vld [vmem:[#allocation7 + $0x28] sm:$0xff]
    %v207 = vld [vmem:[#allocation7 + $0x30] sm:$0xff]
    %v208 = vld [vmem:[#allocation7 + $0x38] sm:$0xff]
    %v209 = vld [vmem:[#allocation7 + $0x40] sm:$0xff]
    %v210 = vld [vmem:[#allocation7 + $0x48] sm:$0xff]
    %v211 = vld [vmem:[#allocation7 + $0x50] sm:$0xff]
    %v212 = vld [vmem:[#allocation7 + $0x58] sm:$0xff]
    %v213 = vld [vmem:[#allocation7 + $0x60] sm:$0xff]
    %v214 = vld [vmem:[#allocation7 + $0x68] sm:$0xff]
    %v215 = vld [vmem:[#allocation7 + $0x70] sm:$0xff]
    %v216 = vld [vmem:[#allocation7 + $0x78] sm:$0xff]
    %v217 = vld [vmem:[#allocation7 + $0x80] sm:$0xff]
    %v218 = vld [vmem:[#allocation7 + $0x88] sm:$0xff]
    %v219 = vld [vmem:[#allocation7 + $0x90] sm:$0xff]
    %v220 = vld [vmem:[#allocation7 + $0x98] sm:$0xff]
    %v221 = vld [vmem:[#allocation7 + $0xa0] sm:$0xff]
    %v222 = vld [vmem:[#allocation7 + $0xa8] sm:$0xff]
    %v223 = vld [vmem:[#allocation7 + $0xb0] sm:$0xff]
    %v224 = vld [vmem:[#allocation7 + $0xb8] sm:$0xff]
    %v225 = vld [vmem:[#allocation7 + $0xc0] sm:$0xff]
    %v226 = vld [vmem:[#allocation7 + $0xc8] sm:$0xff]
    %v227 = vld [vmem:[#allocation7 + $0xd0] sm:$0xff]
    %v228 = vld [vmem:[#allocation7 + $0xd8] sm:$0xff]
    %v229 = vld [vmem:[#allocation7 + $0xe0] sm:$0xff]
    %v230 = vld [vmem:[#allocation7 + $0xe8] sm:$0xff]
    %v231 = vld [vmem:[#allocation7 + $0xf0] sm:$0xff]
    %v232 = vld [vmem:[#allocation7 + $0xf8] sm:$0xff]
    %v233 = vld [vmem:[%s4] sm:$0x3]
    %v235 = vlaneseq
    %v236 = vshrl.u32 %v235, 7
    %v237 = vsub.s32 0, %v236
    %v238 = vrot.slane %v233, %v237
    %v239 = vlaneseq
    %v240 = vshrl.u32 %v239, 7
    %v241 = vsub.s32 1, %v240
    %v242 = vrot.slane %v233, %v241
    %245 = vmatprep.subr.mxu0 %v202
    %246 = vmatpush1.msra.mxu0 %v201
    %247 = vmatprep.subr.mxu0 %v204
    %248 = vmatpush1.msra.mxu0 %v203
    %249 = vmatprep.subr.mxu0 %v206
    %250 = vmatpush1.msra.mxu0 %v205
    %251 = vmatprep.subr.mxu0 %v208
    %252 = vmatpush1.msra.mxu0 %v207
    %253 = vmatprep.subr.mxu0 %v210
    %254 = vmatpush1.msra.mxu0 %v209
    %255 = vmatprep.subr.mxu0 %v212
    %256 = vmatpush1.msra.mxu0 %v211
    %257 = vmatprep.subr.mxu0 %v214
    %258 = vmatpush1.msra.mxu0 %v213
    %259 = vmatprep.subr.mxu0 %v216
    %260 = vmatpush1.msra.mxu0 %v215
    %261 = vmatprep.subr.mxu0 %v218
    %262 = vmatpush1.msra.mxu0 %v217
    %263 = vmatprep.subr.mxu0 %v220
    %264 = vmatpush1.msra.mxu0 %v219
    %265 = vmatprep.subr.mxu0 %v222
    %266 = vmatpush1.msra.mxu0 %v221
    %267 = vmatprep.subr.mxu0 %v224
    %268 = vmatpush1.msra.mxu0 %v223
    %269 = vmatprep.subr.mxu0 %v226
    %270 = vmatpush1.msra.mxu0 %v225
    %271 = vmatprep.subr.mxu0 %v228
    %272 = vmatpush1.msra.mxu0 %v227
    %273 = vmatprep.subr.mxu0 %v230
    %274 = vmatpush1.msra.mxu0 %v229
    %275 = vmatprep.subr.mxu0 %v232
    %276 = vmatpush1.msra.mxu0 %v231
    %277 = vmatprep.subr.mxu0 0.0
    %278 = vmatpush1.msra.mxu0 0.0
    %279 = vmatprep.subr.mxu0 0.0
    %280 = vmatpush1.msra.mxu0 0.0
    %281 = vmatprep.subr.mxu0 0.0
    %282 = vmatpush1.msra.mxu0 0.0
    %283 = vmatprep.subr.mxu0 0.0
    %284 = vmatpush1.msra.mxu0 0.0
    %285 = vmatprep.subr.mxu0 0.0
    %286 = vmatpush1.msra.mxu0 0.0
    %287 = vmatprep.subr.mxu0 0.0
    %288 = vmatpush1.msra.mxu0 0.0
    %289 = vmatprep.subr.mxu0 0.0
    %290 = vmatpush1.msra.mxu0 0.0
    %291 = vmatprep.subr.mxu0 0.0
    %292 = vmatpush1.msra.mxu0 0.0
    %293 = vmatprep.subr.mxu0 0.0
    %294 = vmatpush1.msra.mxu0 0.0
    %295 = vmatprep.subr.mxu0 0.0
    %296 = vmatpush1.msra.mxu0 0.0
    %297 = vmatprep.subr.mxu0 0.0
    %298 = vmatpush1.msra.mxu0 0.0
    %299 = vmatprep.subr.mxu0 0.0
    %300 = vmatpush1.msra.mxu0 0.0
    %301 = vmatprep.subr.mxu0 0.0
    %302 = vmatpush1.msra.mxu0 0.0
    %303 = vmatprep.subr.mxu0 0.0
    %304 = vmatpush1.msra.mxu0 0.0
    %305 = vmatprep.subr.mxu0 0.0
    %306 = vmatpush1.msra.mxu0 0.0
    %307 = vmatprep.subr.mxu0 0.0
    %308 = vmatpush1.msra.mxu0 0.0
    %309 = vmatprep.mubr.f32.mxu0 0.0
    %310 = vmatmul.mubr.f32.gmra.mrb[0].mxu0 %v199
    %v311 = vpop.f32.mrb[0].mxu0
    %v312 = vadd.f32 %v238, %v311
    %v313 = vpop.f32.mrb[0].mxu0
    %v314 = vadd.f32 %v242, %v313
    %315 = vmatprep.mubr.f32.mxu0 0.0
    %316 = vmatmul.mubr.f32.gmra.mrb[0].mxu0 %v200
    %v317 = vpop.f32.mrb[0].mxu0
    %v318 = vadd.f32 %v238, %v317
    %v319 = vpop.f32.mrb[0].mxu0
    %v320 = vadd.f32 %v242, %v319
    %321 = vdwg.mxu0
    %v322 = vmax.f32 %v312, 0.0
    %v323 = vmax.f32 %v314, 0.0
    %v324 = vmax.f32 %v318, 0.0
    %v325 = vmax.f32 %v320, 0.0
    %v326 = vld [vmem:[#allocation8] sm:$0xff]
    %v327 = vld [vmem:[#allocation8 + $0x8] sm:$0xff]
    %v328 = vld [vmem:[#allocation8 + $0x10] sm:$0xff]
    %v329 = vld [vmem:[#allocation8 + $0x18] sm:$0xff]
    %v330 = vld [vmem:[#allocation8 + $0x20] sm:$0xff]
    %v331 = vld [vmem:[#allocation8 + $0x28] sm:$0xff]
    %v332 = vld [vmem:[#allocation8 + $0x30] sm:$0xff]
    %v333 = vld [vmem:[#allocation8 + $0x38] sm:$0xff]
    %v334 = vld [vmem:[#allocation8 + $0x40] sm:$0xff]
    %v335 = vld [vmem:[#allocation8 + $0x48] sm:$0xff]
    %v336 = vld [vmem:[#allocation8 + $0x50] sm:$0xff]
    %v337 = vld [vmem:[#allocation8 + $0x58] sm:$0xff]
    %v338 = vld [vmem:[#allocation8 + $0x60] sm:$0xff]
    %v339 = vld [vmem:[#allocation8 + $0x68] sm:$0xff]
    %v340 = vld [vmem:[#allocation8 + $0x70] sm:$0xff]
    %v341 = vld [vmem:[#allocation8 + $0x78] sm:$0xff]
    %v342 = vld [vmem:[#allocation8 + $0x80] sm:$0xff]
    %v343 = vld [vmem:[#allocation8 + $0x88] sm:$0xff]
    %v344 = vld [vmem:[#allocation8 + $0x90] sm:$0xff]
    %v345 = vld [vmem:[#allocation8 + $0x98] sm:$0xff]
    %v346 = vld [vmem:[#allocation8 + $0xa0] sm:$0xff]
    %v347 = vld [vmem:[#allocation8 + $0xa8] sm:$0xff]
    %v348 = vld [vmem:[#allocation8 + $0xb0] sm:$0xff]
    %v349 = vld [vmem:[#allocation8 + $0xb8] sm:$0xff]
    %v350 = vld [vmem:[#allocation8 + $0xc0] sm:$0xff]
    %v351 = vld [vmem:[#allocation8 + $0xc8] sm:$0xff]
    %v352 = vld [vmem:[#allocation8 + $0xd0] sm:$0xff]
    %v353 = vld [vmem:[#allocation8 + $0xd8] sm:$0xff]
    %v354 = vld [vmem:[#allocation8 + $0xe0] sm:$0xff]
    %v355 = vld [vmem:[#allocation8 + $0xe8] sm:$0xff]
    %v356 = vld [vmem:[#allocation8 + $0xf0] sm:$0xff]
    %v357 = vld [vmem:[#allocation8 + $0xf8] sm:$0xff]
    %v358 = vld [vmem:[%s6] sm:$0x1]
    %v360 = vlaneseq
    %v361 = vshrl.u32 %v360, 7
    %v362 = vsub.s32 0, %v361
    %v363 = vrot.slane %v358, %v362
    %365 = vmatprep.subr.mxu0 0.0
    %366 = vmatpush1.msra.mxu0 %v326
    %367 = vmatprep.subr.mxu0 0.0
    %368 = vmatpush1.msra.mxu0 %v327
    %369 = vmatprep.subr.mxu0 0.0
    %370 = vmatpush1.msra.mxu0 %v328
    %371 = vmatprep.subr.mxu0 0.0
    %372 = vmatpush1.msra.mxu0 %v329
    %373 = vmatprep.subr.mxu0 0.0
    %374 = vmatpush1.msra.mxu0 %v330
    %375 = vmatprep.subr.mxu0 0.0
    %376 = vmatpush1.msra.mxu0 %v331
    %377 = vmatprep.subr.mxu0 0.0
    %378 = vmatpush1.msra.mxu0 %v332
    %379 = vmatprep.subr.mxu0 0.0
    %380 = vmatpush1.msra.mxu0 %v333
    %381 = vmatprep.subr.mxu0 0.0
    %382 = vmatpush1.msra.mxu0 %v334
    %383 = vmatprep.subr.mxu0 0.0
    %384 = vmatpush1.msra.mxu0 %v335
    %385 = vmatprep.subr.mxu0 0.0
    %386 = vmatpush1.msra.mxu0 %v336
    %387 = vmatprep.subr.mxu0 0.0
    %388 = vmatpush1.msra.mxu0 %v337
    %389 = vmatprep.subr.mxu0 0.0
    %390 = vmatpush1.msra.mxu0 %v338
    %391 = vmatprep.subr.mxu0 0.0
    %392 = vmatpush1.msra.mxu0 %v339
    %393 = vmatprep.subr.mxu0 0.0
    %394 = vmatpush1.msra.mxu0 %v340
    %395 = vmatprep.subr.mxu0 0.0
    %396 = vmatpush1.msra.mxu0 %v341
    %397 = vmatprep.subr.mxu0 0.0
    %398 = vmatpush1.msra.mxu0 %v342
    %399 = vmatprep.subr.mxu0 0.0
    %400 = vmatpush1.msra.mxu0 %v343
    %401 = vmatprep.subr.mxu0 0.0
    %402 = vmatpush1.msra.mxu0 %v344
    %403 = vmatprep.subr.mxu0 0.0
    %404 = vmatpush1.msra.mxu0 %v345
    %405 = vmatprep.subr.mxu0 0.0
    %406 = vmatpush1.msra.mxu0 %v346
    %407 = vmatprep.subr.mxu0 0.0
    %408 = vmatpush1.msra.mxu0 %v347
    %409 = vmatprep.subr.mxu0 0.0
    %410 = vmatpush1.msra.mxu0 %v348
    %411 = vmatprep.subr.mxu0 0.0
    %412 = vmatpush1.msra.mxu0 %v349
    %413 = vmatprep.subr.mxu0 0.0
    %414 = vmatpush1.msra.mxu0 %v350
    %415 = vmatprep.subr.mxu0 0.0
    %416 = vmatpush1.msra.mxu0 %v351
    %417 = vmatprep.subr.mxu0 0.0
    %418 = vmatpush1.msra.mxu0 %v352
    %419 = vmatprep.subr.mxu0 0.0
    %420 = vmatpush1.msra.mxu0 %v353
    %421 = vmatprep.subr.mxu0 0.0
    %422 = vmatpush1.msra.mxu0 %v354
    %423 = vmatprep.subr.mxu0 0.0
    %424 = vmatpush1.msra.mxu0 %v355
    %425 = vmatprep.subr.mxu0 0.0
    %426 = vmatpush1.msra.mxu0 %v356
    %427 = vmatprep.subr.mxu0 0.0
    %428 = vmatpush1.msra.mxu0 %v357
    %429 = vmatprep.mubr.f32.mxu0 %v323
    %430 = vmatmul.mubr.f32.gmra.mrb[0].mxu0 %v322
    %v431 = vpop.f32.mrb[0].mxu0
    %v432 = vadd.f32 %v363, %v431
    %v433 = vpop.f32.mrb[0].mxu0
    %434 = vmatprep.mubr.f32.mxu0 %v325
    %435 = vmatmul.mubr.f32.gmra.mrb[0].mxu0 %v324
    %v436 = vpop.f32.mrb[0].mxu0
    %v437 = vadd.f32 %v363, %v436
    %v438 = vpop.f32.mrb[0].mxu0
    %439 = vdwg.mxu0
    %v440 = vmax.f32 %v432, 0.0
    %v441 = vmax.f32 %v437, 0.0
    %v442 = vld [vmem:[#allocation10] sm:$0xff]
    %v443 = vld [vmem:[#allocation10 + $0x8] sm:$0xff]
    %v444 = vld [vmem:[#allocation10 + $0x10] sm:$0xff]
    %v445 = vld [vmem:[#allocation10 + $0x18] sm:$0xff]
    %v446 = vld [vmem:[#allocation10 + $0x20] sm:$0xff]
    %v447 = vld [vmem:[#allocation10 + $0x28] sm:$0xff]
    %v448 = vld [vmem:[#allocation10 + $0x30] sm:$0xff]
    %v449 = vld [vmem:[#allocation10 + $0x38] sm:$0xff]
    %v450 = vld [vmem:[#allocation10 + $0x40] sm:$0xff]
    %v451 = vld [vmem:[#allocation10 + $0x48] sm:$0xff]
    %v452 = vld [vmem:[#allocation10 + $0x50] sm:$0xff]
    %v453 = vld [vmem:[#allocation10 + $0x58] sm:$0xff]
    %v454 = vld [vmem:[#allocation10 + $0x60] sm:$0xff]
    %v455 = vld [vmem:[#allocation10 + $0x68] sm:$0xff]
    %v456 = vld [vmem:[#allocation10 + $0x70] sm:$0xff]
    %v457 = vld [vmem:[#allocation10 + $0x78] sm:$0xff]
    %v458 = vld [vmem:[%s8] sm:$0x1]
    %v460 = vlaneseq
    %v461 = vshrl.u32 %v460, 7
    %v462 = vsub.s32 0, %v461
    %v463 = vrot.slane %v458, %v462
    %465 = vmatprep.subr.mxu0 0.0
    %466 = vmatpush1.msra.mxu0 %v442
    %467 = vmatprep.subr.mxu0 0.0
    %468 = vmatpush1.msra.mxu0 %v443
    %469 = vmatprep.subr.mxu0 0.0
    %470 = vmatpush1.msra.mxu0 %v444
    %471 = vmatprep.subr.mxu0 0.0
    %472 = vmatpush1.msra.mxu0 %v445
    %473 = vmatprep.subr.mxu0 0.0
    %474 = vmatpush1.msra.mxu0 %v446
    %475 = vmatprep.subr.mxu0 0.0
    %476 = vmatpush1.msra.mxu0 %v447
    %477 = vmatprep.subr.mxu0 0.0
    %478 = vmatpush1.msra.mxu0 %v448
    %479 = vmatprep.subr.mxu0 0.0
    %480 = vmatpush1.msra.mxu0 %v449
    %481 = vmatprep.subr.mxu0 0.0
    %482 = vmatpush1.msra.mxu0 %v450
    %483 = vmatprep.subr.mxu0 0.0
    %484 = vmatpush1.msra.mxu0 %v451
    %485 = vmatprep.subr.mxu0 0.0
    %486 = vmatpush1.msra.mxu0 %v452
    %487 = vmatprep.subr.mxu0 0.0
    %488 = vmatpush1.msra.mxu0 %v453
    %489 = vmatprep.subr.mxu0 0.0
    %490 = vmatpush1.msra.mxu0 %v454
    %491 = vmatprep.subr.mxu0 0.0
    %492 = vmatpush1.msra.mxu0 %v455
    %493 = vmatprep.subr.mxu0 0.0
    %494 = vmatpush1.msra.mxu0 %v456
    %495 = vmatprep.subr.mxu0 0.0
    %496 = vmatpush1.msra.mxu0 %v457
    %497 = vmatprep.subr.mxu0 0.0
    %498 = vmatpush1.msra.mxu0 0.0
    %499 = vmatprep.subr.mxu0 0.0
    %500 = vmatpush1.msra.mxu0 0.0
    %501 = vmatprep.subr.mxu0 0.0
    %502 = vmatpush1.msra.mxu0 0.0
    %503 = vmatprep.subr.mxu0 0.0
    %504 = vmatpush1.msra.mxu0 0.0
    %505 = vmatprep.subr.mxu0 0.0
    %506 = vmatpush1.msra.mxu0 0.0
    %507 = vmatprep.subr.mxu0 0.0
    %508 = vmatpush1.msra.mxu0 0.0
    %509 = vmatprep.subr.mxu0 0.0
    %510 = vmatpush1.msra.mxu0 0.0
    %511 = vmatprep.subr.mxu0 0.0
    %512 = vmatpush1.msra.mxu0 0.0
    %513 = vmatprep.subr.mxu0 0.0
    %514 = vmatpush1.msra.mxu0 0.0
    %515 = vmatprep.subr.mxu0 0.0
    %516 = vmatpush1.msra.mxu0 0.0
    %517 = vmatprep.subr.mxu0 0.0
    %518 = vmatpush1.msra.mxu0 0.0
    %519 = vmatprep.subr.mxu0 0.0
    %520 = vmatpush1.msra.mxu0 0.0
    %521 = vmatprep.subr.mxu0 0.0
    %522 = vmatpush1.msra.mxu0 0.0
    %523 = vmatprep.subr.mxu0 0.0
    %524 = vmatpush1.msra.mxu0 0.0
    %525 = vmatprep.subr.mxu0 0.0
    %526 = vmatpush1.msra.mxu0 0.0
    %527 = vmatprep.subr.mxu0 0.0
    %528 = vmatpush1.msra.mxu0 0.0
    %529 = vmatprep.mubr.f32.mxu0 0.0
    %530 = vmatmul.mubr.f32.gmra.mrb[0].mxu0 %v440
    %v531 = vpop.f32.mrb[0].mxu0
    %v532 = vadd.f32 %v463, %v531
    %v533 = vpop.f32.mrb[0].mxu0
    %534 = vmatprep.mubr.f32.mxu0 0.0
    %535 = vmatmul.mubr.f32.gmra.mrb[0].mxu0 %v441
    %v536 = vpop.f32.mrb[0].mxu0
    %v537 = vadd.f32 %v463, %v536
    %v538 = vpop.f32.mrb[0].mxu0
    %539 = vdwg.mxu0
    %v540 = vxor.u32 %v532, 2147483648
    %v541 = vxor.u32 %v537, 2147483648
    %v542 = vmul.f32 %v540, 1.442695
    %v543 = vpow.pop %v542
    %v544 = vmul.f32 %v541, 1.442695
    %v545 = vpow.pop %v544
    %v546 = vadd.f32 %v543, 1.0
    %v547 = vadd.f32 %v545, 1.0
    %v548 = vrcp.pop %v546
    %v549 = vmul.f32 1.0, %v548
    %v550 = vrcp.pop %v547
    %v551 = vmul.f32 1.0, %v550
    %v552 = vmul.f32 %v549, 100.0
    %v553 = vmul.f32 %v551, 100.0
    %554 = vst [vmem:[#allocation11] sm:$0xff] %v552
    %555 = vst [vmem:[#allocation11 + $0x8] sm:$0xff] %v553
    // Predicated region
    $region58: #{tpu_custom_call.1} parent=1 // pred_check
      _
    $region59: #{tpu_custom_call.1} parent=1 // pred_check_branch
      %557 = sbr.rel (0) target = $region61
    $region60: #{tpu_custom_call.1} parent=1 // pred_region
      %s559 = ssub.s32 256, 256
      %560 = vsyncadd [#allocation4], %s559
      %s561 = sshll.u32 [#allocation11], 4
      %s562 = int_to_ptr.vmem [resolvable:$true] %s561
      %567 = dma.vmem_to_hbm [thread:$0]  %s562, 256, %s9, [#allocation4], 128, 128, 8
    $region61: #{tpu_custom_call.1} parent=1 // pred_fallthru
      _
    // Predicated region
    $region62: #{tpu_custom_call.1} parent=1 // pred_check
      _
    $region63: #{tpu_custom_call.1} parent=1 // pred_check_branch
      %569 = sbr.rel (0) target = $region65
    $region64: #{tpu_custom_call.1} parent=1 // pred_region
      %570 = dma.done [#allocation4], 256
    $region65: #{tpu_custom_call.1} parent=1 // pred_fallthru
      _
    %571 = vsyncpa [#allocation3], 1
    %572 = vsyncpa [#allocation6], 1
    %573 = vsyncpa [#allocation9], 1
    %574 = vsyncpa [#allocation4], 1

</llo_original>
